<compile_context>
chip_gen: v7x
topology: tpu7x:2x2x1
jax: 0.10.0
libtpu: 0.0.40
codegen_flags: <defaults>
</compile_context>

<pallas_src>
import functools

import jax
import jax.numpy as jnp
from jax.experimental import pallas as pl
from jax.experimental.pallas import tpu as pltpu


def _relation_attn_kernel(q_ref, k_ref, vaug_ref, rel_ref, mbias_ref, ctx_ref,
                          *, compute_dtype, use_mxu, approx_recip):
    """One grid step == one (batch, Q-tile). All scalar scales pre-folded host-side."""
    q = q_ref[0]                                   # (H, TQ)  f32, a folded in
    k = k_ref[0]                                   # (H, K)   f32
    rel = rel_ref[0]                               # (H, TQ, K) stream dtype, b folded in
    mbias = mbias_ref[0]                           # (TQ, K)  bf16 in {0, -1e20}

    # Logits in f32; the -1e20 mask add stays in f32 so absorption reproduces the
    # reference's replace-then-softmax semantics (incl. fully-masked-row uniform case).
    logits = (q[:, :, None] * k[:, None, :]
              + rel.astype(jnp.float32)
              + mbias.astype(jnp.float32)[None, :, :])          # (H, TQ, K)

    m = jnp.max(logits, axis=-1, keepdims=True)                 # XLU lane reduction
    # exp pipeline in compute_dtype (bf16 on v6e/v7x fast path: 2x VPU/EUP
    # throughput and half the VMEM for `e`); max and accumulation stay f32.
    e = jnp.exp((logits - m).astype(compute_dtype))             # (H, TQ, K)

    if use_mxu:
        # Offload both K-contractions (sum(e) and sum(e*v)) to the otherwise-idle
        # MXU: one batched matmul of e against the tiny per-head (2, K) matrix
        # [ones; w_v*v], accumulating in f32.
        vaug = vaug_ref[0].astype(compute_dtype)                 # (H, 2, K)
        sv = jax.lax.dot_general(
            e, vaug,
            dimension_numbers=(((2,), (2,)), ((0,), (0,))),      # 'hqk,hck->hqc'
            preferred_element_type=jnp.float32)                  # (H, TQ, 2)
        s = sv[:, :, 0]                                          # softmax denominator
        ctx_un = sv[:, :, 1]                                     # unnormalized context
    else:
        # VPU/XLU fallback (bit-tight f32 validation path).
        e32 = e.astype(jnp.float32)
        v = vaug_ref[0][:, 1, :].astype(jnp.float32)             # (H, K)
        s = jnp.sum(e32, axis=-1)                                # (H, TQ)
        ctx_un = jnp.sum(e32 * v[:, None, :], axis=-1)           # (H, TQ)

    # Normalize AFTER the contraction: one reciprocal on a tiny (H, TQ) tensor.
    ctx = ctx_un * pl.reciprocal(s, approx=approx_recip)
    ctx_ref[0] = ctx.astype(ctx_ref.dtype)


def _vmem_budgets():
    """Derive (vmem_limit_bytes, tile_budget_bytes) from the physical VMEM size.

    ~78% of physical capacity as the Mosaic scoped-VMEM limit (64 MiB -> ~50 MiB
    on v7x, 128 MiB -> ~100 MiB on v5e/v6e), minus 4 MiB slack for compiler
    scratch when sizing the tiles.
    """
    try:
        cap = int(pltpu.get_tpu_info().vmem_capacity_bytes)
    except Exception:
        cap = 64 * 1024 * 1024          # conservative fallback: v7x-sized VMEM
    vmem_limit = cap * 25 // 32
    tile_budget = max(vmem_limit - 4 * 1024 * 1024, 8 * 1024 * 1024)
    return vmem_limit, tile_budget


def _choose_q_tile(Q, K, H, rel_bytes, comp_bytes, use_mxu, budget_bytes):
    """Largest lane-aligned Q tile whose TRUE VMEM footprint fits the budget.

    Counts the double-buffered pipeline buffers AND the in-kernel f32
    temporaries (logits, e, the f32 upcast of a narrow rel stream, and the e*v
    product on the VPU path) -- roughly 2-3 extra full-size f32 tiles live at
    peak on top of the 2x pipeline buffers.
    """
    def footprint(tq):
        rel = H * tq * K * rel_bytes                               # relation tile
        mb = tq * K * 2                                            # bf16 mask bias
        small = H * K * 4 + H * tq * 4 + H * 8 * K * 4 + H * tq * 4  # k, q, v_aug, out
        pipelined = 2 * (rel + mb + small)                         # Pallas double-buffers
        tmp = H * tq * K * (4                                      # logits (f32)
                            + comp_bytes                           # e
                            + (4 if rel_bytes < 4 else 0)          # rel f32 upcast
                            + (0 if use_mxu else 4))               # e*v product
        return pipelined + tmp

    if Q <= 128:
        return Q                         # small problems: one (full-extent) tile
    best, tq = 128, 128
    while tq <= Q:
        if footprint(tq) <= budget_bytes:
            best = tq
        tq += 128
    return best


def relation_mhsa(query, keys, values, relation, mask, params, embed_size,
                  heads, *, relation_dtype=jnp.float32, compute_dtype=None,
                  use_mxu=None, approx_recip=None, q_tile=None,
                  relation_is_nhqk=False):
    """Pallas forward for RelationMultiHeadSelfAttention (head_dim == 1).

    relation_dtype : HBM dtype of the dominant relation stream (bf16 halves it).
    compute_dtype  : dtype of the (logits-m)/exp pipeline; default follows
                     relation_dtype. On v5e (no bf16 VPU/EUP) pair a bf16
                     stream with compute_dtype=jnp.float32.
    use_mxu        : offload the two K-contractions to the MXU (default: on for
                     bf16 compute, where the kernel is VALU/EUP-bound).
    approx_recip   : EUP approx reciprocal for the softmax denominator
                     (default: on for bf16 compute; ~1e-3 error is irrelevant there).
    relation_is_nhqk: producer already emits relation as (N, H, Q, K) -> skips
                     the transpose pass on the dominant tensor entirely.
    """
    N, Q, E = query.shape
    K = keys.shape[1]
    H = heads
    head_dim = embed_size // heads
    assert head_dim * heads == embed_size
    assert head_dim == 1, "module forward is only well-formed for head_dim == 1"
    assert E == H

    relation_dtype = jnp.dtype(relation_dtype)
    if compute_dtype is None:
        compute_dtype = (jnp.bfloat16 if relation_dtype == jnp.dtype(jnp.bfloat16)
                         else jnp.float32)
    compute_dtype = jnp.dtype(compute_dtype)
    fast = compute_dtype == jnp.dtype(jnp.bfloat16)
    use_mxu = fast if use_mxu is None else use_mxu
    approx_recip = fast if approx_recip is None else approx_recip

    # ---- fold every scalar into relayout passes that already exist ----------
    inv_sqrt_e = 1.0 / float(embed_size) ** 0.5
    fw = params["fuse_w"]
    a = fw[0, 0] * params["w_q"] * params["w_k"] * inv_sqrt_e
    b = fw[0, 1] * params["w_r"] * inv_sqrt_e
    # fc_fuse bias is constant along K -> cancels in the softmax (shift invariance).

    # Layout plumbing (fuses into single XLA passes under jit; best case the
    # producer already emits (N,H,Q,K) and the dominant tensor is touched once).
    q_t = jnp.transpose(query, (0, 2, 1)).astype(jnp.float32) * a        # (N,H,Q)
    k_t = jnp.transpose(keys, (0, 2, 1)).astype(jnp.float32)             # (N,H,K)
    v_t = jnp.transpose(values, (0, 2, 1)).astype(jnp.float32) * params["w_v"]
    v_aug = jnp.stack([jnp.ones_like(v_t), v_t], axis=2)                 # (N,H,2,K)
    rel_nhqk = relation if relation_is_nhqk else jnp.transpose(relation, (0, 3, 1, 2))
    rel_t = (rel_nhqk * b).astype(relation_dtype)                        # scale+cast in one pass
    if mask is None:
        mbias = jnp.zeros((N, Q, K), jnp.bfloat16)
    else:
        mbias = jnp.where(mask[:, 0] == 1, jnp.float32(-1e20),
                          jnp.float32(0.0)).astype(jnp.bfloat16)         # (N,Q,K)

    # ---- tiling --------------------------------------------------------------
    vmem_limit, tile_budget = _vmem_budgets()
    tq = q_tile if q_tile is not None else _choose_q_tile(
        Q, K, H, relation_dtype.itemsize, compute_dtype.itemsize, use_mxu,
        tile_budget)
    n_q = pl.cdiv(Q, tq)                 # partial last tile is masked by Pallas
    if N * n_q < 2 and tq >= 256:
        tq //= 2                         # v7x megacore: give both TCs work
        n_q = pl.cdiv(Q, tq)
    # TODO(synk): for very large K on v7x (64 MiB VMEM), add an innermost
    # "arbitrary" K grid axis with an online-softmax accumulator.

    # Grid order matters: N outer, Q-tiles inner, so k_t / v_aug (block index
    # (n, 0, ...)) are only re-DMA'd when the batch index changes. Do not
    # "simplify" by swapping the axes.
    grid_spec = pltpu.PrefetchScalarGridSpec(
        num_scalar_prefetch=0,
        grid=(N, n_q),
        in_specs=[
            pl.BlockSpec((1, H, tq), lambda n, i: (n, 0, i)),            # q_t
            pl.BlockSpec((1, H, K), lambda n, i: (n, 0, 0)),             # k_t
            pl.BlockSpec((1, H, 2, K), lambda n, i: (n, 0, 0, 0)),       # v_aug
            pl.BlockSpec((1, H, tq, K), lambda n, i: (n, 0, i, 0)),      # rel_t
            pl.BlockSpec((1, tq, K), lambda n, i: (n, i, 0)),            # mask bias
        ],
        out_specs=pl.BlockSpec((1, H, tq), lambda n, i: (n, 0, i)),      # ctx_t
    )

    kernel = functools.partial(_relation_attn_kernel,
                               compute_dtype=compute_dtype,
                               use_mxu=use_mxu,
                               approx_recip=approx_recip)

    ctx_t = pl.pallas_call(
        kernel,
        out_shape=jax.ShapeDtypeStruct((N, H, Q), jnp.float32),
        grid_spec=grid_spec,
        compiler_params=pltpu.CompilerParams(
            dimension_semantics=("parallel", "parallel"),
            vmem_limit_bytes=vmem_limit,
        ),
    )(q_t, k_t, v_aug, rel_t, mbias)

    # fc_out stays outside the kernel: one batched XLA matmul over all rows.
    ctx = jnp.transpose(ctx_t, (0, 2, 1))                                # (N, Q, E)
    return ctx @ params["w_out"].T + params["b_out"]


def reference(query, keys, values, relation, mask, params, embed_size, heads):
    """Pure-JAX mirror of the PyTorch forward (head_dim == 1)."""
    qp = query * params["w_q"]
    kp = keys * params["w_k"]
    vp = values * params["w_v"]
    rp = relation * params["w_r"]
    energy = jnp.einsum("nqh,nkh->nhqk", qp, kp)
    rel_perm = jnp.transpose(rp, (0, 3, 1, 2))                   # (N, H, Q, K)
    fw, fb = params["fuse_w"], params["fuse_b"]
    fused = fw[0, 0] * energy + fw[0, 1] * rel_perm + fb[0]
    fused = jnp.where(mask == 1, jnp.float32(-1e20), fused)      # mask (N,1,Q,K)
    attn = jax.nn.softmax(fused / (embed_size ** 0.5), axis=3)
    ctx = jnp.einsum("nhqk,nkh->nqh", attn, vp)
    return ctx @ params["w_out"].T + params["b_out"]


if __name__ == "__main__":
    N, L = 2, 16
    heads = 8
    embed_size = 8          # head_dim = embed_size // heads = 1 (see NOTE above)

    key = jax.random.PRNGKey(0)
    ks = jax.random.split(key, 12)

    query = jax.random.normal(ks[0], (N, L, embed_size), jnp.float32)
    keys_ = jax.random.normal(ks[1], (N, L, embed_size), jnp.float32)
    values = jax.random.normal(ks[2], (N, L, embed_size), jnp.float32)
    relation = jax.random.normal(ks[3], (N, L, L, embed_size), jnp.float32)
    mask = (jax.random.uniform(ks[4], (N, 1, L, L)) < 0.2).astype(jnp.int32)

    params = dict(
        w_q=jax.random.normal(ks[5], ()) * 0.5,                # nn.Linear(1,1,bias=False)
        w_k=jax.random.normal(ks[6], ()) * 0.5,
        w_v=jax.random.normal(ks[7], ()) * 0.5,
        w_r=jax.random.normal(ks[8], ()) * 0.5,
        fuse_w=jax.random.normal(ks[9], (1, 2)) * 0.5,         # nn.Linear(2,1,bias=True)
        fuse_b=jax.random.normal(ks[10], (1,)) * 0.1,
        w_out=jax.random.normal(ks[11], (embed_size, embed_size)) * 0.3,
        b_out=jnp.linspace(-0.1, 0.1, embed_size, dtype=jnp.float32),
    )

    ref = reference(query, keys_, values, relation, mask, params,
                    embed_size, heads)

    # Precise path: f32 stream, f32 compute, VPU/XLU contraction, exact recip.
    fwd_precise = jax.jit(lambda q, k, v, r, m, p: relation_mhsa(
        q, k, v, r, m, p, embed_size, heads))
    out = fwd_precise(query, keys_, values, relation, mask, params)
    jax.block_until_ready(out)
    assert out.shape == (N, L, embed_size)
    assert jnp.allclose(out, ref, rtol=1e-4, atol=1e-5)

    # Fast path (v6e/v7x): bf16 relation stream + bf16 exp pipeline + MXU
    # contraction + approx reciprocal. Looser check (bf16 rounding, approx recip).
    fwd_fast = jax.jit(lambda q, k, v, r, m, p: relation_mhsa(
        q, k, v, r, m, p, embed_size, heads, relation_dtype=jnp.bfloat16))
    out_fast = fwd_fast(query, keys_, values, relation, mask, params)
    jax.block_until_ready(out_fast)
    assert jnp.allclose(out_fast, ref, rtol=5e-2, atol=5e-2)

    print("KERNEL_OK")
</pallas_src>

<mosaic_0001>
module attributes {stable_mosaic.version = 11 : i64} {
  func.func @_relation_attn_kernel(%arg0: i32, %arg1: i32, %arg2: memref<1x8x16xf32, #tpu.memory_space<vmem>>, %arg3: memref<1x8x16xf32, #tpu.memory_space<vmem>>, %arg4: memref<1x8x2x16xf32, #tpu.memory_space<vmem>>, %arg5: memref<1x8x16x16xf32, #tpu.memory_space<vmem>>, %arg6: memref<1x16x16xbf16, #tpu.memory_space<vmem>>, %arg7: memref<1x8x16xf32, #tpu.memory_space<vmem>>) attributes {dimension_semantics = [#tpu.dimension_semantics<parallel>, #tpu.dimension_semantics<parallel>], iteration_bounds = array<i64: 2, 1>, scalar_prefetch = 0 : i64, scratch_operands = 0 : i64, tpu.core_type = #tpu.core_type<tc>, window_params = [{transform_indices = @transform_0, window_bounds = array<i64: 1, 8, 16>}, {transform_indices = @transform_1, window_bounds = array<i64: 1, 8, 16>}, {transform_indices = @transform_2, window_bounds = array<i64: 1, 8, 2, 16>}, {transform_indices = @transform_3, window_bounds = array<i64: 1, 8, 16, 16>}, {transform_indices = @transform_4, window_bounds = array<i64: 1, 16, 16>}, {transform_indices = @transform_5, window_bounds = array<i64: 1, 8, 16>}]} {
    %c0 = arith.constant 0 : index
    %c0_0 = arith.constant 0 : index
    %c0_1 = arith.constant 0 : index
    %0 = vector.load %arg2[%c0, %c0_0, %c0_1] : memref<1x8x16xf32, #tpu.memory_space<vmem>>, vector<1x8x16xf32>
    %1 = vector.shape_cast %0 : vector<1x8x16xf32> to vector<8x16xf32>
    %c0_2 = arith.constant 0 : index
    %c0_3 = arith.constant 0 : index
    %c0_4 = arith.constant 0 : index
    %2 = vector.load %arg3[%c0_2, %c0_3, %c0_4] : memref<1x8x16xf32, #tpu.memory_space<vmem>>, vector<1x8x16xf32>
    %3 = vector.shape_cast %2 : vector<1x8x16xf32> to vector<8x16xf32>
    %c0_5 = arith.constant 0 : index
    %c0_6 = arith.constant 0 : index
    %c0_7 = arith.constant 0 : index
    %c0_8 = arith.constant 0 : index
    %4 = vector.load %arg5[%c0_5, %c0_6, %c0_7, %c0_8] : memref<1x8x16x16xf32, #tpu.memory_space<vmem>>, vector<1x8x16x16xf32>
    %5 = vector.shape_cast %4 : vector<1x8x16x16xf32> to vector<8x16x16xf32>
    %c0_9 = arith.constant 0 : index
    %c0_10 = arith.constant 0 : index
    %c0_11 = arith.constant 0 : index
    %6 = vector.load %arg6[%c0_9, %c0_10, %c0_11] : memref<1x16x16xbf16, #tpu.memory_space<vmem>>, vector<1x16x16xbf16>
    %7 = vector.shape_cast %6 : vector<1x16x16xbf16> to vector<16x16xbf16>
    %8 = vector.shape_cast %1 : vector<8x16xf32> to vector<8x16x1xf32>
    %9 = vector.shape_cast %3 : vector<8x16xf32> to vector<8x1x16xf32>
    %10 = vector.broadcast %8 : vector<8x16x1xf32> to vector<8x16x16xf32>
    %11 = vector.broadcast %9 : vector<8x1x16xf32> to vector<8x16x16xf32>
    %12 = arith.mulf %10, %11 : vector<8x16x16xf32>
    %13 = arith.addf %12, %5 : vector<8x16x16xf32>
    %14 = arith.extf %7 : vector<16x16xbf16> to vector<16x16xf32>
    %15 = vector.shape_cast %14 : vector<16x16xf32> to vector<1x16x16xf32>
    %16 = vector.broadcast %15 : vector<1x16x16xf32> to vector<8x16x16xf32>
    %17 = arith.addf %13, %16 : vector<8x16x16xf32>
    %cst = arith.constant dense<0xFF800000> : vector<8x16xf32>
    %18 = vector.multi_reduction <maximumf>, %17, %cst [2] : vector<8x16x16xf32> to vector<8x16xf32>
    %19 = vector.shape_cast %18 : vector<8x16xf32> to vector<8x16x1xf32>
    %20 = vector.broadcast %19 : vector<8x16x1xf32> to vector<8x16x16xf32>
    %21 = arith.subf %17, %20 : vector<8x16x16xf32>
    %22 = math.exp %21 : vector<8x16x16xf32>
    %c0_12 = arith.constant 0 : index
    %c0_13 = arith.constant 0 : index
    %c0_14 = arith.constant 0 : index
    %c0_15 = arith.constant 0 : index
    %23 = vector.load %arg4[%c0_12, %c0_13, %c0_14, %c0_15] : memref<1x8x2x16xf32, #tpu.memory_space<vmem>>, vector<1x8x2x16xf32>
    %24 = vector.shape_cast %23 : vector<1x8x2x16xf32> to vector<8x2x16xf32>
    %25 = vector.extract_strided_slice %24 {offsets = [0, 1, 0], sizes = [8, 1, 16], strides = [1, 1, 1]} : vector<8x2x16xf32> to vector<8x1x16xf32>
    %26 = vector.shape_cast %25 : vector<8x1x16xf32> to vector<8x16xf32>
    %cst_16 = arith.constant dense<0.000000e+00> : vector<8x16xf32>
    %27 = vector.multi_reduction <add>, %22, %cst_16 [2] : vector<8x16x16xf32> to vector<8x16xf32>
    %28 = vector.shape_cast %26 : vector<8x16xf32> to vector<8x1x16xf32>
    %29 = vector.broadcast %28 : vector<8x1x16xf32> to vector<8x16x16xf32>
    %30 = arith.mulf %22, %29 : vector<8x16x16xf32>
    %cst_17 = arith.constant dense<0.000000e+00> : vector<8x16xf32>
    %31 = vector.multi_reduction <add>, %30, %cst_17 [2] : vector<8x16x16xf32> to vector<8x16xf32>
    %32 = tpu.reciprocal %27 : vector<8x16xf32> -> vector<8x16xf32>
    %33 = arith.mulf %31, %32 : vector<8x16xf32>
    %c0_18 = arith.constant 0 : index
    %c0_19 = arith.constant 0 : index
    %c0_20 = arith.constant 0 : index
    %34 = vector.load %arg7[%c0_18, %c0_19, %c0_20] : memref<1x8x16xf32, #tpu.memory_space<vmem>>, vector<1x8x16xf32>
    %35 = vector.shape_cast %34 : vector<1x8x16xf32> to vector<8x16xf32>
    %36 = vector.shape_cast %33 : vector<8x16xf32> to vector<1x8x16xf32>
    tpu.vector_store %arg7[%c0_18, %c0_19, %c0_20], %36 {strides = array<i32>} : memref<1x8x16xf32, #tpu.memory_space<vmem>>, vector<1x8x16xf32>,
    return
  }
  func.func @transform_0(%arg0: i32, %arg1: i32) -> (i32, i32, i32) {
    %c0_i32 = arith.constant 0 : i32
    %c0_i32_0 = arith.constant 0 : i32
    return %arg0, %c0_i32, %arg1 : i32, i32, i32
  }
  func.func @transform_1(%arg0: i32, %arg1: i32) -> (i32, i32, i32) {
    %c0_i32 = arith.constant 0 : i32
    %c0_i32_0 = arith.constant 0 : i32
    %c0_i32_1 = arith.constant 0 : i32
    return %arg0, %c0_i32, %c0_i32_0 : i32, i32, i32
  }
  func.func @transform_2(%arg0: i32, %arg1: i32) -> (i32, i32, i32, i32) {
    %c0_i32 = arith.constant 0 : i32
    %c0_i32_0 = arith.constant 0 : i32
    %c0_i32_1 = arith.constant 0 : i32
    %c0_i32_2 = arith.constant 0 : i32
    return %arg0, %c0_i32, %c0_i32_0, %c0_i32_1 : i32, i32, i32, i32
  }
  func.func @transform_3(%arg0: i32, %arg1: i32) -> (i32, i32, i32, i32) {
    %c0_i32 = arith.constant 0 : i32
    %c0_i32_0 = arith.constant 0 : i32
    %c0_i32_1 = arith.constant 0 : i32
    return %arg0, %c0_i32, %arg1, %c0_i32_0 : i32, i32, i32, i32
  }
  func.func @transform_4(%arg0: i32, %arg1: i32) -> (i32, i32, i32) {
    %c0_i32 = arith.constant 0 : i32
    %c0_i32_0 = arith.constant 0 : i32
    return %arg0, %arg1, %c0_i32 : i32, i32, i32
  }
  func.func @transform_5(%arg0: i32, %arg1: i32) -> (i32, i32, i32) {
    %c0_i32 = arith.constant 0 : i32
    %c0_i32_0 = arith.constant 0 : i32
    return %arg0, %c0_i32, %arg1 : i32, i32, i32
  }
}

</mosaic_0001>

<llo_original>
// kernel: _lambda_.1
$region0: #{_lambda_.1}
  #allocation0 [shape = 'u32[]', space=smem, size = 0x4, offset = 0x4, fixed_abs, tag = 'smem constant byte address 0x4 - core index']
  #allocation1 [shape = 'u32[144,128]{1,0:T(1,128)}', space=vmem, size = 0x12000, scoped, tag = 'internal scratch']
  %s0 = inlined_call_operand.vmem [shape: f32[2,8,16], index: 0, kind: input, shape index: {}]
  %s1 = inlined_call_operand.vmem [shape: f32[2,8,16], index: 1, kind: input, shape index: {}]
  %s2 = inlined_call_operand.vmem [shape: f32[2,8,2,16], index: 2, kind: input, shape index: {}]
  %s3 = inlined_call_operand.vmem [shape: f32[2,8,16,16], index: 3, kind: input, shape index: {}]
  %s4 = inlined_call_operand.vmem [shape: bf16[2,16,16], index: 4, kind: input, shape index: {}]
  %s5 = inlined_call_operand.vmem [shape: f32[2,8,16], index: 5, kind: output, shape index: {}]
  %s6 = sld [smem:[#allocation0]]
  $region53: #{_lambda_.1} parent=0
    _
  %s8 = ssub.s32 1, %s6
  %s9 = scalar_select 0, %s8, %s6
  loop: start=0, step=1, limit=4
  $region2: #{_lambda_.1} parent=0 // loop_pre_header
    _
  $region3: #{_lambda_.1} parent=0 // loop_header
    %s11 = sphi 0, %s15
    %p12 = scmp.ge.s32.totalorder %s11, 4
    %s18 = sphi 0, %s30
    %s19 = sphi 0, %s26
    %s20 = sphi 0, %s18
    %s21 = sphi 0, %s19
    %s22 = sphi 0, %s20
    %s23 = sphi 0, %s21
    %s35 = sphi 0, %s37
    %s38 = sphi 0, %s35
    %s39 = sphi 0, %s38
    %s55 = sphi 0, %s39
    %s61 = sphi 0, %s63
    %s64 = sphi 0, %s61
    %s65 = sphi 0, %s64
    %s81 = sphi 0, %s65
    %s87 = sphi 0, %s89
    %s90 = sphi 0, %s87
    %s91 = sphi 0, %s90
    %s107 = sphi 0, %s91
    %s115 = sphi 0, %s117
    %s118 = sphi 0, %s115
    %s119 = sphi 0, %s118
    %s135 = sphi 0, %s119
    %s143 = sphi 0, %s145
    %s146 = sphi 0, %s143
    %s147 = sphi 0, %s146
    %s163 = sphi 0, %s147
    %s171 = sphi 0, %s173
    %s174 = sphi 0, %s171
    %s175 = sphi 0, %s174
    %s191 = sphi 0, %s175
  $region4: #{_lambda_.1} parent=0 // loop_header_branch
    %14 = sbr.rel (%p12) target = $region8
  $region5: #{_lambda_.1} parent=0 // loop_body
    %s16 = ssub.s32 %s11, 1
    %s17 = ssub.s32 %s11, 2
    %s24 = sadd.s32 1, %s19
    %p25 = scmp.ge.s32.totalorder %s24, 1
    %s26 = scalar_select %p25, 0, %s24
    %s27 = sadd.s32 1, %s18
    %s28 = scalar_select %p25, %s27, %s18
    %p29 = scmp.ge.s32.totalorder %s28, 2
    %s30 = scalar_select %p29, 0, %s28
    %s31 = ssub.s32 %s18, %s30
    %s32 = ssub.s32 %s19, %s26
    %s33 = sor.u32 %s31, %s32
    %p34 = scmp.eq.s32.totalorder %s33, 0
    %s36 = sadd.s32 %s35, 1
    %s37 = scalar_select %p34, %s35, %s36
    %p40 = pneg %p34
    %p41 = scmp.eq.s32.totalorder %s11, 1
    %p42 = por %p40, %p41
    %p43 = scmp.ne.s32.totalorder %s35, %s38
    %p44 = scmp.eq.s32.totalorder %s11, 0
    %p45 = por %p43, %p44
    %p46 = scmp.ne.s32.totalorder %s35, %s38
    %p47 = scmp.eq.s32.totalorder %s16, 1
    %p48 = por %p46, %p47
    %p49 = scmp.ne.s32.totalorder %s38, %s39
    %p50 = scmp.eq.s32.totalorder %s16, 0
    %p51 = por %p49, %p50
    %p52 = scmp.ne.s32.totalorder %s38, %s39
    %p53 = scmp.eq.s32.totalorder %s17, 1
    %p54 = por %p52, %p53
    %p56 = scmp.ne.s32.totalorder %s39, %s55
    %p57 = scmp.eq.s32.totalorder %s17, 0
    %p58 = por %p56, %p57
    %s59 = ssub.s32 %s18, %s30
    %p60 = scmp.eq.s32.totalorder %s59, 0
    %s62 = sadd.s32 %s61, 1
    %s63 = scalar_select %p60, %s61, %s62
    %p66 = pneg %p60
    %p67 = scmp.eq.s32.totalorder %s11, 1
    %p68 = por %p66, %p67
    %p69 = scmp.ne.s32.totalorder %s61, %s64
    %p70 = scmp.eq.s32.totalorder %s11, 0
    %p71 = por %p69, %p70
    %p72 = scmp.ne.s32.totalorder %s61, %s64
    %p73 = scmp.eq.s32.totalorder %s16, 1
    %p74 = por %p72, %p73
    %p75 = scmp.ne.s32.totalorder %s64, %s65
    %p76 = scmp.eq.s32.totalorder %s16, 0
    %p77 = por %p75, %p76
    %p78 = scmp.ne.s32.totalorder %s64, %s65
    %p79 = scmp.eq.s32.totalorder %s17, 1
    %p80 = por %p78, %p79
    %p82 = scmp.ne.s32.totalorder %s65, %s81
    %p83 = scmp.eq.s32.totalorder %s17, 0
    %p84 = por %p82, %p83
    %s85 = ssub.s32 %s18, %s30
    %p86 = scmp.eq.s32.totalorder %s85, 0
    %s88 = sadd.s32 %s87, 1
    %s89 = scalar_select %p86, %s87, %s88
    %p92 = pneg %p86
    %p93 = scmp.eq.s32.totalorder %s11, 1
    %p94 = por %p92, %p93
    %p95 = scmp.ne.s32.totalorder %s87, %s90
    %p96 = scmp.eq.s32.totalorder %s11, 0
    %p97 = por %p95, %p96
    %p98 = scmp.ne.s32.totalorder %s87, %s90
    %p99 = scmp.eq.s32.totalorder %s16, 1
    %p100 = por %p98, %p99
    %p101 = scmp.ne.s32.totalorder %s90, %s91
    %p102 = scmp.eq.s32.totalorder %s16, 0
    %p103 = por %p101, %p102
    %p104 = scmp.ne.s32.totalorder %s90, %s91
    %p105 = scmp.eq.s32.totalorder %s17, 1
    %p106 = por %p104, %p105
    %p108 = scmp.ne.s32.totalorder %s91, %s107
    %p109 = scmp.eq.s32.totalorder %s17, 0
    %p110 = por %p108, %p109
    %s111 = ssub.s32 %s18, %s30
    %s112 = ssub.s32 %s19, %s26
    %s113 = sor.u32 %s111, %s112
    %p114 = scmp.eq.s32.totalorder %s113, 0
    %s116 = sadd.s32 %s115, 1
    %s117 = scalar_select %p114, %s115, %s116
    %p120 = pneg %p114
    %p121 = scmp.eq.s32.totalorder %s11, 1
    %p122 = por %p120, %p121
    %p123 = scmp.ne.s32.totalorder %s115, %s118
    %p124 = scmp.eq.s32.totalorder %s11, 0
    %p125 = por %p123, %p124
    %p126 = scmp.ne.s32.totalorder %s115, %s118
    %p127 = scmp.eq.s32.totalorder %s16, 1
    %p128 = por %p126, %p127
    %p129 = scmp.ne.s32.totalorder %s118, %s119
    %p130 = scmp.eq.s32.totalorder %s16, 0
    %p131 = por %p129, %p130
    %p132 = scmp.ne.s32.totalorder %s118, %s119
    %p133 = scmp.eq.s32.totalorder %s17, 1
    %p134 = por %p132, %p133
    %p136 = scmp.ne.s32.totalorder %s119, %s135
    %p137 = scmp.eq.s32.totalorder %s17, 0
    %p138 = por %p136, %p137
    %s139 = ssub.s32 %s18, %s30
    %s140 = ssub.s32 %s19, %s26
    %s141 = sor.u32 %s139, %s140
    %p142 = scmp.eq.s32.totalorder %s141, 0
    %s144 = sadd.s32 %s143, 1
    %s145 = scalar_select %p142, %s143, %s144
    %p148 = pneg %p142
    %p149 = scmp.eq.s32.totalorder %s11, 1
    %p150 = por %p148, %p149
    %p151 = scmp.ne.s32.totalorder %s143, %s146
    %p152 = scmp.eq.s32.totalorder %s11, 0
    %p153 = por %p151, %p152
    %p154 = scmp.ne.s32.totalorder %s143, %s146
    %p155 = scmp.eq.s32.totalorder %s16, 1
    %p156 = por %p154, %p155
    %p157 = scmp.ne.s32.totalorder %s146, %s147
    %p158 = scmp.eq.s32.totalorder %s16, 0
    %p159 = por %p157, %p158
    %p160 = scmp.ne.s32.totalorder %s146, %s147
    %p161 = scmp.eq.s32.totalorder %s17, 1
    %p162 = por %p160, %p161
    %p164 = scmp.ne.s32.totalorder %s147, %s163
    %p165 = scmp.eq.s32.totalorder %s17, 0
    %p166 = por %p164, %p165
    %s167 = ssub.s32 %s18, %s30
    %s168 = ssub.s32 %s19, %s26
    %s169 = sor.u32 %s167, %s168
    %p170 = scmp.eq.s32.totalorder %s169, 0
    %s172 = sadd.s32 %s171, 1
    %s173 = scalar_select %p170, %s171, %s172
    %p176 = pneg %p170
    %p177 = scmp.eq.s32.totalorder %s11, 1
    %p178 = por %p176, %p177
    %p179 = scmp.ne.s32.totalorder %s171, %s174
    %p180 = scmp.eq.s32.totalorder %s11, 0
    %p181 = por %p179, %p180
    %p182 = scmp.ne.s32.totalorder %s171, %s174
    %p183 = scmp.eq.s32.totalorder %s16, 1
    %p184 = por %p182, %p183
    %p185 = scmp.ne.s32.totalorder %s174, %s175
    %p186 = scmp.eq.s32.totalorder %s16, 0
    %p187 = por %p185, %p186
    %p188 = scmp.ne.s32.totalorder %s174, %s175
    %p189 = scmp.eq.s32.totalorder %s17, 1
    %p190 = por %p188, %p189
    %p192 = scmp.ne.s32.totalorder %s175, %s191
    %p193 = scmp.eq.s32.totalorder %s17, 0
    %p194 = por %p192, %p193
    %p195 = scmp.le.s32.totalorder 1, %s11
    %p196 = scmp.lt.s32.totalorder %s11, 3
    %p197 = pnand %p195, %p196
    %p198 = pneg %p197
    // Predicated region
    $region9: #{_lambda_.1} parent=5 // pred_check
      _
    $region10: #{_lambda_.1} parent=5 // pred_check_branch
      %200 = sbr.rel (%p197) target = $region12
    $region11: #{_lambda_.1} parent=5 // pred_region
      %s201 = ssub.s32 %s11, 1
    $region12: #{_lambda_.1} parent=5 // pred_fallthru
      _
    %p202 = scmp.lt.s32.totalorder %s11, 2
    // Predicated region
    $region13: #{_lambda_.1} parent=5 // pred_check
      %p203 = pneg %p202
    $region14: #{_lambda_.1} parent=5 // pred_check_branch
      %205 = sbr.rel (%p203) target = $region16
    $region15: #{_lambda_.1} parent=5 // pred_region
      // Predicated region
      $region17: #{_lambda_.1} parent=15 // pred_check
        %p206 = pneg %p45
      $region18: #{_lambda_.1} parent=15 // pred_check_branch
        %208 = sbr.rel (%p206) target = $region20
      $region19: #{_lambda_.1} parent=15 // pred_region
        %p209 = scmp.lt.s32.totalorder %s18, 1
        %s210 = scalar_select %p209, %s18, 1
        %p211 = scmp.lt.s32.totalorder %s19, 0
        %s212 = scalar_select %p211, %s19, 0
        %s213 = sadd.s32 %s212, %s210
        %s214 = smul.addr %s213, 8
        %s215 = scalar_lea.vmem %s0, %s214
      $region20: #{_lambda_.1} parent=15 // pred_fallthru
        _
      // Predicated region
      $region21: #{_lambda_.1} parent=15 // pred_check
        %p216 = pneg %p71
      $region22: #{_lambda_.1} parent=15 // pred_check_branch
        %218 = sbr.rel (%p216) target = $region24
      $region23: #{_lambda_.1} parent=15 // pred_region
        %p219 = scmp.lt.s32.totalorder %s18, 1
        %s220 = scalar_select %p219, %s18, 1
        %s221 = smul.addr %s220, 8
        %s222 = scalar_lea.vmem %s1, %s221
      $region24: #{_lambda_.1} parent=15 // pred_fallthru
        _
      // Predicated region
      $region25: #{_lambda_.1} parent=15 // pred_check
        %p223 = pneg %p97
      $region26: #{_lambda_.1} parent=15 // pred_check_branch
        %225 = sbr.rel (%p223) target = $region28
      $region27: #{_lambda_.1} parent=15 // pred_region
        %p226 = scmp.lt.s32.totalorder %s18, 1
        %s227 = scalar_select %p226, %s18, 1
        %s228 = smul.addr %s227, 8
        %s229 = smul.addr %s228, 2
        %s230 = scalar_lea.vmem %s2, %s229
      $region28: #{_lambda_.1} parent=15 // pred_fallthru
        _
      // Predicated region
      $region29: #{_lambda_.1} parent=15 // pred_check
        %p231 = pneg %p125
      $region30: #{_lambda_.1} parent=15 // pred_check_branch
        %233 = sbr.rel (%p231) target = $region32
      $region31: #{_lambda_.1} parent=15 // pred_region
        %s234 = smul.u32 2, %s19
        %p235 = scmp.lt.s32.totalorder %s18, 1
        %s236 = scalar_select %p235, %s18, 1
        %p237 = scmp.lt.s32.totalorder %s234, 1
        %s238 = scalar_select %p237, %s234, 1
        %s239 = smul.addr %s236, 16
        %s240 = sadd.s32 %s238, %s239
        %s241 = smul.addr %s240, 8
        %s242 = scalar_lea.vmem %s3, %s241
        %s243 = smul.u32 2, %s19
      $region32: #{_lambda_.1} parent=15 // pred_fallthru
        _
      // Predicated region
      $region33: #{_lambda_.1} parent=15 // pred_check
        %p244 = pneg %p153
      $region34: #{_lambda_.1} parent=15 // pred_check_branch
        %246 = sbr.rel (%p244) target = $region36
      $region35: #{_lambda_.1} parent=15 // pred_region
        %s247 = smul.u32 2, %s19
        %p248 = scmp.lt.s32.totalorder %s18, 1
        %s249 = scalar_select %p248, %s18, 1
        %p250 = scmp.lt.s32.totalorder %s247, 1
        %s251 = scalar_select %p250, %s247, 1
        %s252 = smul.addr %s249, 2
        %s253 = sadd.s32 %s251, %s252
        %s254 = smul.addr %s253, 4
        %s255 = scalar_lea.vmem %s4, %s254
        %s256 = smul.u32 2, %s19
      $region36: #{_lambda_.1} parent=15 // pred_fallthru
        _
    $region16: #{_lambda_.1} parent=5 // pred_fallthru
      _
    %p257 = scmp.le.s32.totalorder 1, %s11
    %p258 = scmp.lt.s32.totalorder %s11, 3
    %p259 = pnand %p257, %p258
    %p260 = pneg %p259
    // Predicated region
    $region37: #{_lambda_.1} parent=5 // pred_check
      _
    $region38: #{_lambda_.1} parent=5 // pred_check_branch
      %262 = sbr.rel (%p259) target = $region40
    $region39: #{_lambda_.1} parent=5 // pred_region
      %s263 = ssub.s32 %s11, 1
      %p264 = scmp.lt.s32.totalorder %s20, 1
      %s265 = scalar_select %p264, %s20, 1
      %p266 = scmp.lt.s32.totalorder %s21, 0
      %s267 = scalar_select %p266, %s21, 0
      %s268 = sadd.s32 %s267, %s265
      %s269 = smul.addr %s268, 8
      %s270 = scalar_lea.vmem %s0, %s269
      %p271 = pneg %p51
      %p272 = pneg %p48
      %p273 = scmp.lt.s32.totalorder %s20, 1
      %s274 = scalar_select %p273, %s20, 1
      %s275 = smul.addr %s274, 8
      %s276 = scalar_lea.vmem %s1, %s275
      %p277 = pneg %p77
      %p278 = pneg %p74
      %p279 = scmp.lt.s32.totalorder %s20, 1
      %s280 = scalar_select %p279, %s20, 1
      %s281 = smul.addr %s280, 8
      %s282 = smul.addr %s281, 2
      %s283 = scalar_lea.vmem %s2, %s282
      %p284 = pneg %p103
      %p285 = pneg %p100
      %s286 = smul.u32 2, %s21
      %p287 = scmp.lt.s32.totalorder %s20, 1
      %s288 = scalar_select %p287, %s20, 1
      %p289 = scmp.lt.s32.totalorder %s286, 1
      %s290 = scalar_select %p289, %s286, 1
      %s291 = smul.addr %s288, 16
      %s292 = sadd.s32 %s290, %s291
      %s293 = smul.addr %s292, 8
      %s294 = scalar_lea.vmem %s3, %s293
      %p295 = pneg %p131
      %p296 = pneg %p128
      %s297 = smul.u32 2, %s21
      %p298 = scmp.lt.s32.totalorder %s20, 1
      %s299 = scalar_select %p298, %s20, 1
      %p300 = scmp.lt.s32.totalorder %s297, 1
      %s301 = scalar_select %p300, %s297, 1
      %s302 = smul.addr %s299, 2
      %s303 = sadd.s32 %s301, %s302
      %s304 = smul.addr %s303, 4
      %s305 = scalar_lea.vmem %s4, %s304
      %p306 = pneg %p159
      %p307 = pneg %p156
      %p308 = pneg %p187
      %p309 = pneg %p184
      %p310 = scmp.lt.s32.totalorder %s20, 1
      %s311 = scalar_select %p310, %s20, 1
      %p312 = scmp.lt.s32.totalorder %s21, 0
      %s313 = scalar_select %p312, %s21, 0
      %s314 = sadd.s32 %s313, %s311
      %s315 = smul.addr %s314, 8
      %s316 = scalar_lea.vmem %s5, %s315
      %p317 = scmp.lt.s32.totalorder %s20, 1
      %s318 = scalar_select %p317, %s20, 1
      %p319 = scmp.lt.s32.totalorder %s21, 0
      %s320 = scalar_select %p319, %s21, 0
      %s321 = sadd.s32 %s320, %s318
      %s322 = smul.addr %s321, 8
      %s323 = scalar_lea.vmem %s0, %s322
      %p324 = scmp.lt.s32.totalorder %s20, 1
      %s325 = scalar_select %p324, %s20, 1
      %s326 = smul.addr %s325, 8
      %s327 = scalar_lea.vmem %s1, %s326
      %p328 = scmp.lt.s32.totalorder %s20, 1
      %s329 = scalar_select %p328, %s20, 1
      %s330 = smul.addr %s329, 8
      %s331 = smul.addr %s330, 2
      %s332 = scalar_lea.vmem %s2, %s331
      %s333 = smul.u32 2, %s21
      %p334 = scmp.lt.s32.totalorder %s20, 1
      %s335 = scalar_select %p334, %s20, 1
      %p336 = scmp.lt.s32.totalorder %s333, 1
      %s337 = scalar_select %p336, %s333, 1
      %s338 = smul.addr %s335, 16
      %s339 = sadd.s32 %s337, %s338
      %s340 = smul.addr %s339, 8
      %s341 = scalar_lea.vmem %s3, %s340
      %s342 = smul.u32 2, %s21
      %s343 = smul.u32 2, %s21
      %p344 = scmp.lt.s32.totalorder %s20, 1
      %s345 = scalar_select %p344, %s20, 1
      %p346 = scmp.lt.s32.totalorder %s343, 1
      %s347 = scalar_select %p346, %s343, 1
      %s348 = smul.addr %s345, 2
      %s349 = sadd.s32 %s347, %s348
      %s350 = smul.addr %s349, 4
      %s351 = scalar_lea.vmem %s4, %s350
      %s352 = smul.u32 2, %s21
      %p353 = scmp.lt.s32.totalorder %s20, 1
      %s354 = scalar_select %p353, %s20, 1
      %p355 = scmp.lt.s32.totalorder %s21, 0
      %s356 = scalar_select %p355, %s21, 0
      %s357 = sadd.s32 %s356, %s354
      %s358 = smul.addr %s357, 8
      %s359 = scalar_lea.vmem %s5, %s358
      %v360 = vld [vmem:[%s323] sm:$0xff]
      %v361 = vld [vmem:[%s327] sm:$0xff]
      %v362 = vld [vmem:[%s341] sm:$0xff]
      %v363 = vld [vmem:[%s341 + $0x8] sm:$0xff]
      %v364 = vld [vmem:[%s341 + $0x10] sm:$0xff]
      %v365 = vld [vmem:[%s341 + $0x18] sm:$0xff]
      %v366 = vld [vmem:[%s341 + $0x20] sm:$0xff]
      %v367 = vld [vmem:[%s341 + $0x28] sm:$0xff]
      %v368 = vld [vmem:[%s341 + $0x30] sm:$0xff]
      %v369 = vld [vmem:[%s341 + $0x38] sm:$0xff]
      %v370 = vld [vmem:[%s341 + $0x40] sm:$0xff]
      %v371 = vld [vmem:[%s341 + $0x48] sm:$0xff]
      %v372 = vld [vmem:[%s341 + $0x50] sm:$0xff]
      %v373 = vld [vmem:[%s341 + $0x58] sm:$0xff]
      %v374 = vld [vmem:[%s341 + $0x60] sm:$0xff]
      %v375 = vld [vmem:[%s341 + $0x68] sm:$0xff]
      %v376 = vld [vmem:[%s341 + $0x70] sm:$0xff]
      %v377 = vld [vmem:[%s341 + $0x78] sm:$0xff]
      %v378 = vld [vmem:[%s351] sm:$0xf]
      %v379 = vld [vmem:[%s351 + $0x4] sm:$0xf]
      %v380 = vlaneseq
      %v381 = vshrl.u32 %v380, 7
      %v382 = vsub.s32 0, %v381
      %v383 = vrot.slane %v360, %v382
      %385 = vbcast.lane.b32.xlu0 %v383, 256
      %v386 = vpop.permute.xlu0 %385
      %s388 = sor.u32 256, 8
      %389 = vbcast.lane.b32.xlu0 %v383, %s388
      %v390 = vpop.permute.xlu0 %389
      %v391 = vlaneseq
      %v392 = vshrl.u32 %v391, 7
      %v393 = vsub.s32 1, %v392
      %v394 = vrot.slane %v360, %v393
      %396 = vbcast.lane.b32.xlu0 %v394, 256
      %v397 = vpop.permute.xlu0 %396
      %s399 = sor.u32 256, 8
      %400 = vbcast.lane.b32.xlu0 %v394, %s399
      %v401 = vpop.permute.xlu0 %400
      %v402 = vlaneseq
      %v403 = vshrl.u32 %v402, 7
      %v404 = vsub.s32 2, %v403
      %v405 = vrot.slane %v360, %v404
      %407 = vbcast.lane.b32.xlu0 %v405, 256
      %v408 = vpop.permute.xlu0 %407
      %s410 = sor.u32 256, 8
      %411 = vbcast.lane.b32.xlu0 %v405, %s410
      %v412 = vpop.permute.xlu0 %411
      %v413 = vlaneseq
      %v414 = vshrl.u32 %v413, 7
      %v415 = vsub.s32 3, %v414
      %v416 = vrot.slane %v360, %v415
      %418 = vbcast.lane.b32.xlu0 %v416, 256
      %v419 = vpop.permute.xlu0 %418
      %s421 = sor.u32 256, 8
      %422 = vbcast.lane.b32.xlu0 %v416, %s421
      %v423 = vpop.permute.xlu0 %422
      %v424 = vlaneseq
      %v425 = vshrl.u32 %v424, 7
      %v426 = vsub.s32 4, %v425
      %v427 = vrot.slane %v360, %v426
      %429 = vbcast.lane.b32.xlu0 %v427, 256
      %v430 = vpop.permute.xlu0 %429
      %s432 = sor.u32 256, 8
      %433 = vbcast.lane.b32.xlu0 %v427, %s432
      %v434 = vpop.permute.xlu0 %433
      %v435 = vlaneseq
      %v436 = vshrl.u32 %v435, 7
      %v437 = vsub.s32 5, %v436
      %v438 = vrot.slane %v360, %v437
      %440 = vbcast.lane.b32.xlu0 %v438, 256
      %v441 = vpop.permute.xlu0 %440
      %s443 = sor.u32 256, 8
      %444 = vbcast.lane.b32.xlu0 %v438, %s443
      %v445 = vpop.permute.xlu0 %444
      %v446 = vlaneseq
      %v447 = vshrl.u32 %v446, 7
      %v448 = vsub.s32 6, %v447
      %v449 = vrot.slane %v360, %v448
      %451 = vbcast.lane.b32.xlu0 %v449, 256
      %v452 = vpop.permute.xlu0 %451
      %s454 = sor.u32 256, 8
      %455 = vbcast.lane.b32.xlu0 %v449, %s454
      %v456 = vpop.permute.xlu0 %455
      %v457 = vlaneseq
      %v458 = vshrl.u32 %v457, 7
      %v459 = vsub.s32 7, %v458
      %v460 = vrot.slane %v360, %v459
      %462 = vbcast.lane.b32.xlu0 %v460, 256
      %v463 = vpop.permute.xlu0 %462
      %s465 = sor.u32 256, 8
      %466 = vbcast.lane.b32.xlu0 %v460, %s465
      %v467 = vpop.permute.xlu0 %466
      %v469 = vcombine.high %v361, %v361
      %v471 = vunpack.c.l.s4 1966171168
      %v472 = vunpack.c.0.s8 %v471
      %v473 = vlaneseq
      %v474 = vshrl.u32 %v473, 7
      %v475 = vsub.s32 %v472, %v474
      %v476 = vrot.slane %v361, %v475
      %v478 = vunpack.c.l.s4 1966171168
      %v479 = vunpack.c.0.s8 %v478
      %v480 = vlaneseq
      %v481 = vshrl.u32 %v480, 7
      %v482 = vsub.s32 %v479, %v481
      %v483 = vrot.slane %v469, %v482
      %v484 = vcombine.high %v476, %v476
      %v485 = vcombine.high %v483, %v483
      %v487 = vunpack.c.l.s4 1966171168
      %v488 = vunpack.c.0.s8 %v487
      %v489 = vlaneseq
      %v490 = vshrl.u32 %v489, 7
      %v491 = vsub.s32 %v488, %v490
      %v492 = vrot.slane %v476, %v491
      %v494 = vunpack.c.l.s4 1966171168
      %v495 = vunpack.c.0.s8 %v494
      %v496 = vlaneseq
      %v497 = vshrl.u32 %v496, 7
      %v498 = vsub.s32 %v495, %v497
      %v499 = vrot.slane %v483, %v498
      %v501 = vunpack.c.l.s4 1966171168
      %v502 = vunpack.c.0.s8 %v501
      %v503 = vlaneseq
      %v504 = vshrl.u32 %v503, 7
      %v505 = vsub.s32 %v502, %v504
      %v506 = vrot.slane %v484, %v505
      %v508 = vunpack.c.l.s4 1966171168
      %v509 = vunpack.c.0.s8 %v508
      %v510 = vlaneseq
      %v511 = vshrl.u32 %v510, 7
      %v512 = vsub.s32 %v509, %v511
      %v513 = vrot.slane %v485, %v512
      %v514 = vcombine.high %v492, %v492
      %v515 = vcombine.high %v499, %v499
      %v516 = vcombine.high %v506, %v506
      %v517 = vcombine.high %v513, %v513
      %v518 = vlaneseq
      %v519 = vshrl.u32 %v518, 7
      %v520 = vsub.s32 0, %v519
      %v521 = vrot.slane %v492, %v520
      %v522 = vlaneseq
      %v523 = vshrl.u32 %v522, 7
      %v524 = vsub.s32 0, %v523
      %v525 = vrot.slane %v506, %v524
      %v526 = vlaneseq
      %v527 = vshrl.u32 %v526, 7
      %v528 = vsub.s32 0, %v527
      %v529 = vrot.slane %v514, %v528
      %v530 = vlaneseq
      %v531 = vshrl.u32 %v530, 7
      %v532 = vsub.s32 0, %v531
      %v533 = vrot.slane %v516, %v532
      %v534 = vlaneseq
      %v535 = vshrl.u32 %v534, 7
      %v536 = vsub.s32 0, %v535
      %v537 = vrot.slane %v499, %v536
      %v538 = vlaneseq
      %v539 = vshrl.u32 %v538, 7
      %v540 = vsub.s32 0, %v539
      %v541 = vrot.slane %v513, %v540
      %v542 = vlaneseq
      %v543 = vshrl.u32 %v542, 7
      %v544 = vsub.s32 0, %v543
      %v545 = vrot.slane %v515, %v544
      %v546 = vlaneseq
      %v547 = vshrl.u32 %v546, 7
      %v548 = vsub.s32 0, %v547
      %v549 = vrot.slane %v517, %v548
      %v558 = vmul.f32 %v386, %v521
      %v559 = vmul.f32 %v390, %v521
      %v560 = vmul.f32 %v397, %v525
      %v561 = vmul.f32 %v401, %v525
      %v562 = vmul.f32 %v408, %v529
      %v563 = vmul.f32 %v412, %v529
      %v564 = vmul.f32 %v419, %v533
      %v565 = vmul.f32 %v423, %v533
      %v566 = vmul.f32 %v430, %v537
      %v567 = vmul.f32 %v434, %v537
      %v568 = vmul.f32 %v441, %v541
      %v569 = vmul.f32 %v445, %v541
      %v570 = vmul.f32 %v452, %v545
      %v571 = vmul.f32 %v456, %v545
      %v572 = vmul.f32 %v463, %v549
      %v573 = vmul.f32 %v467, %v549
      %v574 = vadd.f32 %v558, %v362
      %v575 = vadd.f32 %v559, %v363
      %v576 = vadd.f32 %v560, %v364
      %v577 = vadd.f32 %v561, %v365
      %v578 = vadd.f32 %v562, %v366
      %v579 = vadd.f32 %v563, %v367
      %v580 = vadd.f32 %v564, %v368
      %v581 = vadd.f32 %v565, %v369
      %v582 = vadd.f32 %v566, %v370
      %v583 = vadd.f32 %v567, %v371
      %v584 = vadd.f32 %v568, %v372
      %v585 = vadd.f32 %v569, %v373
      %v586 = vadd.f32 %v570, %v374
      %v587 = vadd.f32 %v571, %v375
      %v588 = vadd.f32 %v572, %v376
      %v589 = vadd.f32 %v573, %v377
      %v590 = vunpack.c.l.bf16 %v378
      %v591 = vunpack.c.l.bf16 %v379
      %v592 = vadd.f32 %v574, %v590
      %v593 = vadd.f32 %v575, %v591
      %v594 = vadd.f32 %v576, %v590
      %v595 = vadd.f32 %v577, %v591
      %v596 = vadd.f32 %v578, %v590
      %v597 = vadd.f32 %v579, %v591
      %v598 = vadd.f32 %v580, %v590
      %v599 = vadd.f32 %v581, %v591
      %v600 = vadd.f32 %v582, %v590
      %v601 = vadd.f32 %v583, %v591
      %v602 = vadd.f32 %v584, %v590
      %v603 = vadd.f32 %v585, %v591
      %v604 = vadd.f32 %v586, %v590
      %v605 = vadd.f32 %v587, %v591
      %v606 = vadd.f32 %v588, %v590
      %v607 = vadd.f32 %v589, %v591
      %vm608 = vcmask 130048
      %v609 = vsel %vm608, %v592, -inf
      %610 = vmax.xlane.f32.xlu0 %v609
      %v611 = vpop.xlane.xlu0 %610
      %v612 = vsel %vm608, %v593, -inf
      %613 = vmax.xlane.f32.xlu0 %v612
      %v614 = vpop.xlane.xlu0 %613
      %v615 = vsel %vm608, %v594, -inf
      %616 = vmax.xlane.f32.xlu0 %v615
      %v617 = vpop.xlane.xlu0 %616
      %v618 = vsel %vm608, %v595, -inf
      %619 = vmax.xlane.f32.xlu0 %v618
      %v620 = vpop.xlane.xlu0 %619
      %v621 = vsel %vm608, %v596, -inf
      %622 = vmax.xlane.f32.xlu0 %v621
      %v623 = vpop.xlane.xlu0 %622
      %v624 = vsel %vm608, %v597, -inf
      %625 = vmax.xlane.f32.xlu0 %v624
      %v626 = vpop.xlane.xlu0 %625
      %v627 = vsel %vm608, %v598, -inf
      %628 = vmax.xlane.f32.xlu0 %v627
      %v629 = vpop.xlane.xlu0 %628
      %v630 = vsel %vm608, %v599, -inf
      %631 = vmax.xlane.f32.xlu0 %v630
      %v632 = vpop.xlane.xlu0 %631
      %v633 = vsel %vm608, %v600, -inf
      %634 = vmax.xlane.f32.xlu0 %v633
      %v635 = vpop.xlane.xlu0 %634
      %v636 = vsel %vm608, %v601, -inf
      %637 = vmax.xlane.f32.xlu0 %v636
      %v638 = vpop.xlane.xlu0 %637
      %v639 = vsel %vm608, %v602, -inf
      %640 = vmax.xlane.f32.xlu0 %v639
      %v641 = vpop.xlane.xlu0 %640
      %v642 = vsel %vm608, %v603, -inf
      %643 = vmax.xlane.f32.xlu0 %v642
      %v644 = vpop.xlane.xlu0 %643
      %v645 = vsel %vm608, %v604, -inf
      %646 = vmax.xlane.f32.xlu0 %v645
      %v647 = vpop.xlane.xlu0 %646
      %v648 = vsel %vm608, %v605, -inf
      %649 = vmax.xlane.f32.xlu0 %v648
      %v650 = vpop.xlane.xlu0 %649
      %v651 = vsel %vm608, %v606, -inf
      %652 = vmax.xlane.f32.xlu0 %v651
      %v653 = vpop.xlane.xlu0 %652
      %v654 = vsel %vm608, %v607, -inf
      %655 = vmax.xlane.f32.xlu0 %v654
      %v656 = vpop.xlane.xlu0 %655
      %v657 = vsub.f32 %v592, %v611
      %v658 = vsub.f32 %v593, %v614
      %v659 = vsub.f32 %v594, %v617
      %v660 = vsub.f32 %v595, %v620
      %v661 = vsub.f32 %v596, %v623
      %v662 = vsub.f32 %v597, %v626
      %v663 = vsub.f32 %v598, %v629
      %v664 = vsub.f32 %v599, %v632
      %v665 = vsub.f32 %v600, %v635
      %v666 = vsub.f32 %v601, %v638
      %v667 = vsub.f32 %v602, %v641
      %v668 = vsub.f32 %v603, %v644
      %v669 = vsub.f32 %v604, %v647
      %v670 = vsub.f32 %v605, %v650
      %v671 = vsub.f32 %v606, %v653
      %v672 = vsub.f32 %v607, %v656
      %v673 = vmul.f32 %v657, 1.442695
      %v674 = vpow.pop %v673
      %v675 = vmul.f32 %v658, 1.442695
      %v676 = vpow.pop %v675
      %v677 = vmul.f32 %v659, 1.442695
      %v678 = vpow.pop %v677
      %v679 = vmul.f32 %v660, 1.442695
      %v680 = vpow.pop %v679
      %v681 = vmul.f32 %v661, 1.442695
      %v682 = vpow.pop %v681
      %v683 = vmul.f32 %v662, 1.442695
      %v684 = vpow.pop %v683
      %v685 = vmul.f32 %v663, 1.442695
      %v686 = vpow.pop %v685
      %v687 = vmul.f32 %v664, 1.442695
      %v688 = vpow.pop %v687
      %v689 = vmul.f32 %v665, 1.442695
      %v690 = vpow.pop %v689
      %v691 = vmul.f32 %v666, 1.442695
      %v692 = vpow.pop %v691
      %v693 = vmul.f32 %v667, 1.442695
      %v694 = vpow.pop %v693
      %v695 = vmul.f32 %v668, 1.442695
      %v696 = vpow.pop %v695
      %v697 = vmul.f32 %v669, 1.442695
      %v698 = vpow.pop %v697
      %v699 = vmul.f32 %v670, 1.442695
      %v700 = vpow.pop %v699
      %v701 = vmul.f32 %v671, 1.442695
      %v702 = vpow.pop %v701
      %v703 = vmul.f32 %v672, 1.442695
      %v704 = vpow.pop %v703
      %v705 = vld [vmem:[%s332] sm:$0x3]
      %v706 = vld [vmem:[%s332 + $0x2] sm:$0x3]
      %v707 = vld [vmem:[%s332 + $0x4] sm:$0x3]
      %v708 = vld [vmem:[%s332 + $0x6] sm:$0x3]
      %v709 = vld [vmem:[%s332 + $0x8] sm:$0x3]
      %v710 = vld [vmem:[%s332 + $0xa] sm:$0x3]
      %v711 = vld [vmem:[%s332 + $0xc] sm:$0x3]
      %v712 = vld [vmem:[%s332 + $0xe] sm:$0x3]
      %v713 = vsel %vm608, %v674, 0.0
      %714 = vadd.xlane.f32.xlu0 %v713
      %v715 = vpop.xlane.xlu0 %714
      %v716 = vsel %vm608, %v676, 0.0
      %717 = vadd.xlane.f32.xlu0 %v716
      %v718 = vpop.xlane.xlu0 %717
      %v719 = vsel %vm608, %v678, 0.0
      %720 = vadd.xlane.f32.xlu0 %v719
      %v721 = vpop.xlane.xlu0 %720
      %v722 = vsel %vm608, %v680, 0.0
      %723 = vadd.xlane.f32.xlu0 %v722
      %v724 = vpop.xlane.xlu0 %723
      %v725 = vsel %vm608, %v682, 0.0
      %726 = vadd.xlane.f32.xlu0 %v725
      %v727 = vpop.xlane.xlu0 %726
      %v728 = vsel %vm608, %v684, 0.0
      %729 = vadd.xlane.f32.xlu0 %v728
      %v730 = vpop.xlane.xlu0 %729
      %v731 = vsel %vm608, %v686, 0.0
      %732 = vadd.xlane.f32.xlu0 %v731
      %v733 = vpop.xlane.xlu0 %732
      %v734 = vsel %vm608, %v688, 0.0
      %735 = vadd.xlane.f32.xlu0 %v734
      %v736 = vpop.xlane.xlu0 %735
      %v737 = vsel %vm608, %v690, 0.0
      %738 = vadd.xlane.f32.xlu0 %v737
      %v739 = vpop.xlane.xlu0 %738
      %v740 = vsel %vm608, %v692, 0.0
      %741 = vadd.xlane.f32.xlu0 %v740
      %v742 = vpop.xlane.xlu0 %741
      %v743 = vsel %vm608, %v694, 0.0
      %744 = vadd.xlane.f32.xlu0 %v743
      %v745 = vpop.xlane.xlu0 %744
      %v746 = vsel %vm608, %v696, 0.0
      %747 = vadd.xlane.f32.xlu0 %v746
      %v748 = vpop.xlane.xlu0 %747
      %v749 = vsel %vm608, %v698, 0.0
      %750 = vadd.xlane.f32.xlu0 %v749
      %v751 = vpop.xlane.xlu0 %750
      %v752 = vsel %vm608, %v700, 0.0
      %753 = vadd.xlane.f32.xlu0 %v752
      %v754 = vpop.xlane.xlu0 %753
      %v755 = vsel %vm608, %v702, 0.0
      %756 = vadd.xlane.f32.xlu0 %v755
      %v757 = vpop.xlane.xlu0 %756
      %v758 = vsel %vm608, %v704, 0.0
      %759 = vadd.xlane.f32.xlu0 %v758
      %v760 = vpop.xlane.xlu0 %759
      %v761 = vlaneseq
      %v762 = vshrl.u32 %v761, 7
      %v763 = vsub.s32 1, %v762
      %v764 = vrot.slane %v705, %v763
      %v765 = vlaneseq
      %v766 = vshrl.u32 %v765, 7
      %v767 = vsub.s32 1, %v766
      %v768 = vrot.slane %v706, %v767
      %v769 = vlaneseq
      %v770 = vshrl.u32 %v769, 7
      %v771 = vsub.s32 1, %v770
      %v772 = vrot.slane %v707, %v771
      %v773 = vlaneseq
      %v774 = vshrl.u32 %v773, 7
      %v775 = vsub.s32 1, %v774
      %v776 = vrot.slane %v708, %v775
      %v777 = vlaneseq
      %v778 = vshrl.u32 %v777, 7
      %v779 = vsub.s32 1, %v778
      %v780 = vrot.slane %v709, %v779
      %v781 = vlaneseq
      %v782 = vshrl.u32 %v781, 7
      %v783 = vsub.s32 1, %v782
      %v784 = vrot.slane %v710, %v783
      %v785 = vlaneseq
      %v786 = vshrl.u32 %v785, 7
      %v787 = vsub.s32 1, %v786
      %v788 = vrot.slane %v711, %v787
      %v789 = vlaneseq
      %v790 = vshrl.u32 %v789, 7
      %v791 = vsub.s32 1, %v790
      %v792 = vrot.slane %v712, %v791
      %v793 = vmul.f32 %v674, %v764
      %v794 = vmul.f32 %v676, %v764
      %v795 = vmul.f32 %v678, %v768
      %v796 = vmul.f32 %v680, %v768
      %v797 = vmul.f32 %v682, %v772
      %v798 = vmul.f32 %v684, %v772
      %v799 = vmul.f32 %v686, %v776
      %v800 = vmul.f32 %v688, %v776
      %v801 = vmul.f32 %v690, %v780
      %v802 = vmul.f32 %v692, %v780
      %v803 = vmul.f32 %v694, %v784
      %v804 = vmul.f32 %v696, %v784
      %v805 = vmul.f32 %v698, %v788
      %v806 = vmul.f32 %v700, %v788
      %v807 = vmul.f32 %v702, %v792
      %v808 = vmul.f32 %v704, %v792
      %v809 = vsel %vm608, %v793, 0.0
      %810 = vadd.xlane.f32.xlu0 %v809
      %v811 = vpop.xlane.xlu0 %810
      %v812 = vsel %vm608, %v794, 0.0
      %813 = vadd.xlane.f32.xlu0 %v812
      %v814 = vpop.xlane.xlu0 %813
      %v815 = vsel %vm608, %v795, 0.0
      %816 = vadd.xlane.f32.xlu0 %v815
      %v817 = vpop.xlane.xlu0 %816
      %v818 = vsel %vm608, %v796, 0.0
      %819 = vadd.xlane.f32.xlu0 %v818
      %v820 = vpop.xlane.xlu0 %819
      %v821 = vsel %vm608, %v797, 0.0
      %822 = vadd.xlane.f32.xlu0 %v821
      %v823 = vpop.xlane.xlu0 %822
      %v824 = vsel %vm608, %v798, 0.0
      %825 = vadd.xlane.f32.xlu0 %v824
      %v826 = vpop.xlane.xlu0 %825
      %v827 = vsel %vm608, %v799, 0.0
      %828 = vadd.xlane.f32.xlu0 %v827
      %v829 = vpop.xlane.xlu0 %828
      %v830 = vsel %vm608, %v800, 0.0
      %831 = vadd.xlane.f32.xlu0 %v830
      %v832 = vpop.xlane.xlu0 %831
      %v833 = vsel %vm608, %v801, 0.0
      %834 = vadd.xlane.f32.xlu0 %v833
      %v835 = vpop.xlane.xlu0 %834
      %v836 = vsel %vm608, %v802, 0.0
      %837 = vadd.xlane.f32.xlu0 %v836
      %v838 = vpop.xlane.xlu0 %837
      %v839 = vsel %vm608, %v803, 0.0
      %840 = vadd.xlane.f32.xlu0 %v839
      %v841 = vpop.xlane.xlu0 %840
      %v842 = vsel %vm608, %v804, 0.0
      %843 = vadd.xlane.f32.xlu0 %v842
      %v844 = vpop.xlane.xlu0 %843
      %v845 = vsel %vm608, %v805, 0.0
      %846 = vadd.xlane.f32.xlu0 %v845
      %v847 = vpop.xlane.xlu0 %846
      %v848 = vsel %vm608, %v806, 0.0
      %849 = vadd.xlane.f32.xlu0 %v848
      %v850 = vpop.xlane.xlu0 %849
      %v851 = vsel %vm608, %v807, 0.0
      %852 = vadd.xlane.f32.xlu0 %v851
      %v853 = vpop.xlane.xlu0 %852
      %v854 = vsel %vm608, %v808, 0.0
      %855 = vadd.xlane.f32.xlu0 %v854
      %v856 = vpop.xlane.xlu0 %855
      %v857 = vrcp.pop %v715
      %v858 = vrcp.pop %v718
      %v859 = vrcp.pop %v721
      %v860 = vrcp.pop %v724
      %v861 = vrcp.pop %v727
      %v862 = vrcp.pop %v730
      %v863 = vrcp.pop %v733
      %v864 = vrcp.pop %v736
      %v865 = vrcp.pop %v739
      %v866 = vrcp.pop %v742
      %v867 = vrcp.pop %v745
      %v868 = vrcp.pop %v748
      %v869 = vrcp.pop %v751
      %v870 = vrcp.pop %v754
      %v871 = vrcp.pop %v757
      %v872 = vrcp.pop %v760
      %v873 = vmul.f32 %v811, %v857
      %v874 = vmul.f32 %v814, %v858
      %v875 = vmul.f32 %v817, %v859
      %v876 = vmul.f32 %v820, %v860
      %v877 = vmul.f32 %v823, %v861
      %v878 = vmul.f32 %v826, %v862
      %v879 = vmul.f32 %v829, %v863
      %v880 = vmul.f32 %v832, %v864
      %v881 = vmul.f32 %v835, %v865
      %v882 = vmul.f32 %v838, %v866
      %v883 = vmul.f32 %v841, %v867
      %v884 = vmul.f32 %v844, %v868
      %v885 = vmul.f32 %v847, %v869
      %v886 = vmul.f32 %v850, %v870
      %v887 = vmul.f32 %v853, %v871
      %v888 = vmul.f32 %v856, %v872
      %v905 = vlaneseq
      %v906 = vand.u32 %v905, 127
      %v907 = vlaneseq
      %v908 = vshrl.u32 %v907, 7
      %v909 = vsub.s32 %v906, %v908
      %v910 = vrot.slane %v873, %v909
      %v911 = vadd.s32 %v906, 4294967288
      %v912 = vlaneseq
      %v913 = vshrl.u32 %v912, 7
      %v914 = vsub.s32 %v911, %v913
      %v915 = vrot.slane %v874, %v914
      %vm916 = vcmask 130112
      %v917 = vsel %vm916, %v915, %v910
      %v918 = vlaneseq
      %v919 = vshrl.u32 %v918, 7
      %v920 = vsub.s32 %v906, %v919
      %v921 = vrot.slane %v875, %v920
      %v922 = vlaneseq
      %v923 = vshrl.u32 %v922, 7
      %v924 = vsub.s32 %v911, %v923
      %v925 = vrot.slane %v876, %v924
      %v926 = vsel %vm916, %v925, %v921
      %v927 = vlaneseq
      %v928 = vshrl.u32 %v927, 7
      %v929 = vsub.s32 %v906, %v928
      %v930 = vrot.slane %v877, %v929
      %v931 = vlaneseq
      %v932 = vshrl.u32 %v931, 7
      %v933 = vsub.s32 %v911, %v932
      %v934 = vrot.slane %v878, %v933
      %v935 = vsel %vm916, %v934, %v930
      %v936 = vlaneseq
      %v937 = vshrl.u32 %v936, 7
      %v938 = vsub.s32 %v906, %v937
      %v939 = vrot.slane %v879, %v938
      %v940 = vlaneseq
      %v941 = vshrl.u32 %v940, 7
      %v942 = vsub.s32 %v911, %v941
      %v943 = vrot.slane %v880, %v942
      %v944 = vsel %vm916, %v943, %v939
      %v945 = vlaneseq
      %v946 = vshrl.u32 %v945, 7
      %v947 = vsub.s32 %v906, %v946
      %v948 = vrot.slane %v881, %v947
      %v949 = vlaneseq
      %v950 = vshrl.u32 %v949, 7
      %v951 = vsub.s32 %v911, %v950
      %v952 = vrot.slane %v882, %v951
      %v953 = vsel %vm916, %v952, %v948
      %v954 = vlaneseq
      %v955 = vshrl.u32 %v954, 7
      %v956 = vsub.s32 %v906, %v955
      %v957 = vrot.slane %v883, %v956
      %v958 = vlaneseq
      %v959 = vshrl.u32 %v958, 7
      %v960 = vsub.s32 %v911, %v959
      %v961 = vrot.slane %v884, %v960
      %v962 = vsel %vm916, %v961, %v957
      %v963 = vlaneseq
      %v964 = vshrl.u32 %v963, 7
      %v965 = vsub.s32 %v906, %v964
      %v966 = vrot.slane %v885, %v965
      %v967 = vlaneseq
      %v968 = vshrl.u32 %v967, 7
      %v969 = vsub.s32 %v911, %v968
      %v970 = vrot.slane %v886, %v969
      %v971 = vsel %vm916, %v970, %v966
      %v972 = vlaneseq
      %v973 = vshrl.u32 %v972, 7
      %v974 = vsub.s32 %v906, %v973
      %v975 = vrot.slane %v887, %v974
      %v976 = vlaneseq
      %v977 = vshrl.u32 %v976, 7
      %v978 = vsub.s32 %v911, %v977
      %v979 = vrot.slane %v888, %v978
      %v980 = vsel %vm916, %v979, %v975
      %vm981 = vcmask 1041409
      %v982 = vsel %vm981, %v926, %v917
      %vm983 = vcmask 1042434
      %v984 = vsel %vm983, %v935, %v982
      %vm985 = vcmask 1043459
      %v986 = vsel %vm985, %v944, %v984
      %vm987 = vcmask 1044484
      %v988 = vsel %vm987, %v953, %v986
      %vm989 = vcmask 1045509
      %v990 = vsel %vm989, %v962, %v988
      %vm991 = vcmask 1046534
      %v992 = vsel %vm991, %v971, %v990
      %vm993 = vcmask 1047559
      %v994 = vsel %vm993, %v980, %v992
      %996 = vst.msk [vmem:[%s359] sm:$0xff] %vm608, %v994
      %p997 = scmp.lt.s32.totalorder %s20, 1
      %s998 = scalar_select %p997, %s20, 1
      %p999 = scmp.lt.s32.totalorder %s21, 0
      %s1000 = scalar_select %p999, %s21, 0
      %s1001 = sadd.s32 %s1000, %s998
      %s1002 = smul.addr %s1001, 8
      %s1003 = scalar_lea.vmem %s5, %s1002
      // Predicated region
      $region41: #{_lambda_.1} parent=39 // pred_check
        %p1004 = pneg %p184
      $region42: #{_lambda_.1} parent=39 // pred_check_branch
        %1006 = sbr.rel (%p1004) target = $region44
      $region43: #{_lambda_.1} parent=39 // pred_region
        _
      $region44: #{_lambda_.1} parent=39 // pred_fallthru
        _
    $region40: #{_lambda_.1} parent=5 // pred_fallthru
      _
    %p1007 = scmp.le.s32.totalorder 2, %s11
    // Predicated region
    $region45: #{_lambda_.1} parent=5 // pred_check
      %p1008 = pneg %p1007
    $region46: #{_lambda_.1} parent=5 // pred_check_branch
      %1010 = sbr.rel (%p1008) target = $region48
    $region47: #{_lambda_.1} parent=5 // pred_region
      %s1011 = ssub.s32 %s11, 2
      // Predicated region
      $region49: #{_lambda_.1} parent=47 // pred_check
        %p1012 = pneg %p190
      $region50: #{_lambda_.1} parent=47 // pred_check_branch
        %1014 = sbr.rel (%p1012) target = $region52
      $region51: #{_lambda_.1} parent=47 // pred_region
        %p1015 = scmp.lt.s32.totalorder %s22, 1
        %s1016 = scalar_select %p1015, %s22, 1
        %p1017 = scmp.lt.s32.totalorder %s23, 0
        %s1018 = scalar_select %p1017, %s23, 0
        %s1019 = sadd.s32 %s1018, %s1016
        %s1020 = smul.addr %s1019, 8
        %s1021 = scalar_lea.vmem %s5, %s1020
      $region52: #{_lambda_.1} parent=47 // pred_fallthru
        _
    $region48: #{_lambda_.1} parent=5 // pred_fallthru
      _
  $region6: #{_lambda_.1} parent=0 // loop_footer
    %s15 = sadd.s32 1, %s11
  $region7: #{_lambda_.1} parent=0 // loop_footer_branch
    %10 = sbr.rel target = $region3
  $region8: #{_lambda_.1} parent=0 // loop_exit
    _

</llo_original>
